<compile_context>
chip_gen: v5e
topology: v5e:2x2
jax: 0.10.0
libtpu: 0.0.40
codegen_flags: <defaults>
</compile_context>

<pallas_src>
import functools

import jax
import jax.numpy as jnp
from jax.experimental import pallas as pl
from jax.experimental.pallas import tpu as pltpu

LANE = 128        # TPU lane width; vocab dim is padded to a multiple of this.
MAX_TILE_N = 512  # rows (B*T) per grid step; large enough to amortize step
                  # overhead, small enough that v7x keeps >=2 parallel tiles
                  # for realistic batch sizes.


def _round_up(x, m):
    return ((x + m - 1) // m) * m


def _pick_tile_n(n):
    """Row-tile size: multiple of 8 (sublane), capped at MAX_TILE_N, and sized
    so the grid has >= 2 steps whenever possible (v7x megacore sharding)."""
    if n <= 8:
        return 8
    half = _round_up((n + 1) // 2, 8)
    return min(MAX_TILE_N, half)


# ---------------------------------------------------------------------------
# Kernels
# ---------------------------------------------------------------------------
def _embed_tile(tokens, table_ref, tile_n, vp):
    """Embedding lookup for one row tile as a one-hot matmul (exact row select
    on the MXU).  Returns (logits, col_iota)."""
    col_iota = jax.lax.broadcasted_iota(jnp.int32, (tile_n, vp), 1)
    one_hot = (tokens == col_iota).astype(jnp.float32)
    logits = jnp.dot(one_hot, table_ref[...],
                     preferred_element_type=jnp.float32)
    # TODO(synk): for large vocabularies replace the one-hot matmul with a
    # scalar-prefetch / manual-DMA row gather so the (V, V) table never has to
    # be fully VMEM-resident.
    return logits, col_iota


def _ce_rows(logits, col_iota, targets, tile_n, vocab_size, n_valid):
    """Per-row cross-entropy (lse - target_logit), padded rows/cols masked."""
    logits_m = jnp.where(col_iota < vocab_size, logits, -jnp.inf)
    m = jnp.max(logits_m, axis=-1, keepdims=True)
    lse = m + jnp.log(jnp.sum(jnp.exp(logits_m - m), axis=-1, keepdims=True))
    tgt_logit = jnp.sum(jnp.where(targets == col_iota, logits, 0.0),
                        axis=-1, keepdims=True)
    row_iota = jax.lax.broadcasted_iota(jnp.int32, (tile_n, 1), 0)
    global_row = pl.program_id(0) * tile_n + row_iota
    return jnp.where(global_row < n_valid, lse - tgt_logit, 0.0)


def _bigram_loss_logits_kernel(tokens_ref, targets_ref, table_ref,
                               logits_ref, rowloss_ref, *, vocab_size, n_valid):
    """One row tile: embedding lookup + logits writeback + per-row CE."""
    tile_n = tokens_ref.shape[0]
    vp = table_ref.shape[1]
    tokens = tokens_ref[...]
    logits, col_iota = _embed_tile(tokens, table_ref, tile_n, vp)
    logits_ref[...] = logits
    rowloss_ref[...] = _ce_rows(logits, col_iota, targets_ref[...],
                                tile_n, vocab_size, n_valid)


def _bigram_loss_only_kernel(tokens_ref, targets_ref, table_ref,
                             rowloss_ref, *, vocab_size, n_valid):
    """Loss-only variant: no logits HBM writeback (training fast path)."""
    tile_n = tokens_ref.shape[0]
    vp = table_ref.shape[1]
    tokens = tokens_ref[...]
    logits, col_iota = _embed_tile(tokens, table_ref, tile_n, vp)
    rowloss_ref[...] = _ce_rows(logits, col_iota, targets_ref[...],
                                tile_n, vocab_size, n_valid)


def _bigram_logits_kernel(tokens_ref, table_ref, logits_ref):
    """Logits-only variant (targets=None / generation path)."""
    tile_n = tokens_ref.shape[0]
    vp = table_ref.shape[1]
    logits, _ = _embed_tile(tokens_ref[...], table_ref, tile_n, vp)
    logits_ref[...] = logits


_COMPILER_PARAMS = pltpu.CompilerParams(
    dimension_semantics=("parallel",),   # row tiles are independent
    vmem_limit_bytes=16 * 1024 * 1024,   # kernel needs <1 MiB; safe on v5e-v7x
)


# ---------------------------------------------------------------------------
# pallas_call wrappers
# ---------------------------------------------------------------------------
@functools.partial(jax.jit, static_argnames=("vocab_size", "n_valid", "tile_n"))
def _bigram_pallas_loss_logits(tokens_2d, targets_2d, table_padded,
                               vocab_size, n_valid, tile_n):
    n_pad = tokens_2d.shape[0]
    vp = table_padded.shape[1]
    num_tiles = n_pad // tile_n
    kernel = functools.partial(_bigram_loss_logits_kernel,
                               vocab_size=vocab_size, n_valid=n_valid)
    logits, row_loss = pl.pallas_call(
        kernel,
        grid=(num_tiles,),
        out_shape=(
            jax.ShapeDtypeStruct((n_pad, vp), jnp.float32),
            jax.ShapeDtypeStruct((n_pad, 1), jnp.float32),
        ),
        in_specs=[
            pl.BlockSpec((tile_n, 1), lambda i: (i, 0)),   # tokens
            pl.BlockSpec((tile_n, 1), lambda i: (i, 0)),   # targets
            pl.BlockSpec((vp, vp), lambda i: (0, 0)),      # table (resident)
        ],
        out_specs=(
            pl.BlockSpec((tile_n, vp), lambda i: (i, 0)),  # logits (lane-dense)
            pl.BlockSpec((tile_n, 1), lambda i: (i, 0)),   # per-row CE
        ),
        compiler_params=_COMPILER_PARAMS,
    )(tokens_2d, targets_2d, table_padded)
    loss = jnp.sum(row_loss) / jnp.float32(n_valid)
    return logits, loss


@functools.partial(jax.jit, static_argnames=("vocab_size", "n_valid", "tile_n"))
def _bigram_pallas_loss_only(tokens_2d, targets_2d, table_padded,
                             vocab_size, n_valid, tile_n):
    n_pad = tokens_2d.shape[0]
    vp = table_padded.shape[1]
    num_tiles = n_pad // tile_n
    kernel = functools.partial(_bigram_loss_only_kernel,
                               vocab_size=vocab_size, n_valid=n_valid)
    row_loss = pl.pallas_call(
        kernel,
        grid=(num_tiles,),
        out_shape=jax.ShapeDtypeStruct((n_pad, 1), jnp.float32),
        in_specs=[
            pl.BlockSpec((tile_n, 1), lambda i: (i, 0)),
            pl.BlockSpec((tile_n, 1), lambda i: (i, 0)),
            pl.BlockSpec((vp, vp), lambda i: (0, 0)),
        ],
        out_specs=pl.BlockSpec((tile_n, 1), lambda i: (i, 0)),
        compiler_params=_COMPILER_PARAMS,
    )(tokens_2d, targets_2d, table_padded)
    return jnp.sum(row_loss) / jnp.float32(n_valid)


@functools.partial(jax.jit, static_argnames=("tile_n",))
def _bigram_pallas_logits(tokens_2d, table_padded, tile_n):
    n_pad = tokens_2d.shape[0]
    vp = table_padded.shape[1]
    num_tiles = n_pad // tile_n
    return pl.pallas_call(
        _bigram_logits_kernel,
        grid=(num_tiles,),
        out_shape=jax.ShapeDtypeStruct((n_pad, vp), jnp.float32),
        in_specs=[
            pl.BlockSpec((tile_n, 1), lambda i: (i, 0)),
            pl.BlockSpec((vp, vp), lambda i: (0, 0)),
        ],
        out_specs=pl.BlockSpec((tile_n, vp), lambda i: (i, 0)),
        compiler_params=_COMPILER_PARAMS,
    )(tokens_2d, table_padded)


# ---------------------------------------------------------------------------
# Module
# ---------------------------------------------------------------------------
class BigramLanguageModel:
    """JAX/Pallas port of the PyTorch BigramLanguageModel forward pass."""

    def __init__(self, vocab_size, key):
        # nn.Embedding default init: N(0, 1)
        self.vocab_size = vocab_size
        self.token_embedding_table = jax.random.normal(
            key, (vocab_size, vocab_size), dtype=jnp.float32)
        # Pad both vocab axes to the 128-lane width once, host-side
        # (padded rows are never selected; padded cols are masked in-kernel).
        vp = _round_up(vocab_size, LANE)
        self._vocab_padded = vp
        self._table_padded = jnp.pad(
            self.token_embedding_table,
            ((0, vp - vocab_size), (0, vp - vocab_size)))

    def _pad_tokens(self, flat_ids, n_pad):
        n = flat_ids.shape[0]
        return jnp.pad(flat_ids.reshape(n, 1).astype(jnp.int32),
                       ((0, n_pad - n), (0, 0)))

    def forward(self, context, targets=None, return_logits=True):
        B, T = context.shape
        N = B * T
        tile_n = _pick_tile_n(N)
        n_pad = _round_up(N, tile_n)
        tokens_2d = self._pad_tokens(context.reshape(N), n_pad)

        if targets is None:
            logits_flat = _bigram_pallas_logits(
                tokens_2d, self._table_padded, tile_n)
            # TODO(synk): this wrapper slice re-copies the logits in HBM; for
            # generation prefer last_token_logits(), which only embeds B rows.
            logits = logits_flat[:N, :self.vocab_size].reshape(
                B, T, self.vocab_size)
            return logits, None

        targets_2d = self._pad_tokens(targets.reshape(N), n_pad)

        if not return_logits:
            # Training fast path: skip the logits HBM writeback entirely.
            loss = _bigram_pallas_loss_only(
                tokens_2d, targets_2d, self._table_padded,
                self.vocab_size, N, tile_n)
            return None, loss

        logits_flat, loss = _bigram_pallas_loss_logits(
            tokens_2d, targets_2d, self._table_padded,
            self.vocab_size, N, tile_n)
        # Matches PyTorch: logits were flattened to (B*T, C) before CE.
        return logits_flat[:N, :self.vocab_size], loss

    __call__ = forward

    def last_token_logits(self, context):
        """Generation fast path: logits for the last token of each sequence
        only (B rows instead of B*T)."""
        B = context.shape[0]
        last = context[:, -1]
        tile_n = _pick_tile_n(B)
        n_pad = _round_up(B, tile_n)
        tokens_2d = self._pad_tokens(last, n_pad)
        logits_flat = _bigram_pallas_logits(tokens_2d, self._table_padded, tile_n)
        return logits_flat[:B, :self.vocab_size]

    # TODO(synk): generate() uses torch.multinomial sampling in a host-side
    # autoregressive loop; not a kernel op, so it is not ported here.


if __name__ == "__main__":
    key = jax.random.PRNGKey(0)
    k_table, k_ctx, k_tgt = jax.random.split(key, 3)

    vocab_size = 65   # e.g. tiny-Shakespeare char vocab
    B, T = 2, 8

    model = BigramLanguageModel(vocab_size, k_table)

    context = jax.random.randint(k_ctx, (B, T), 0, vocab_size, dtype=jnp.int32)
    targets = jax.random.randint(k_tgt, (B, T), 0, vocab_size, dtype=jnp.int32)

    # With targets: (B*T, C) logits + scalar CE loss.
    logits, loss = model(context, targets)
    jax.block_until_ready((logits, loss))

    # Loss-only fast path (training loop that discards logits).
    _, loss_only = model(context, targets, return_logits=False)
    jax.block_until_ready(loss_only)

    # Without targets: (B, T, C) logits, loss is None.
    logits_nt, loss_nt = model(context, None)
    jax.block_until_ready(logits_nt)

    # Generation fast path: last-token logits only.
    last_logits = model.last_token_logits(context)
    jax.block_until_ready(last_logits)

    # Reference check in plain JAX (embedding gather + cross entropy).
    ref_logits = model.token_embedding_table[context.reshape(-1)]
    ref_lse = jax.scipy.special.logsumexp(ref_logits, axis=-1)
    ref_loss = jnp.mean(ref_lse - ref_logits[jnp.arange(B * T),
                                             targets.reshape(-1)])
    ref_last = model.token_embedding_table[context[:, -1]]

    assert logits.shape == (B * T, vocab_size)
    assert logits_nt.shape == (B, T, vocab_size)
    assert last_logits.shape == (B, vocab_size)
    assert loss_nt is None
    assert jnp.allclose(logits, ref_logits, atol=1e-5)
    assert jnp.allclose(loss, ref_loss, atol=1e-5)
    assert jnp.allclose(loss_only, ref_loss, atol=1e-5)
    assert jnp.allclose(logits_nt.reshape(B * T, vocab_size), ref_logits,
                        atol=1e-5)
    assert jnp.allclose(last_logits, ref_last, atol=1e-5)

    print("KERNEL_OK")
</pallas_src>

<mosaic_0001>
module attributes {stable_mosaic.version = 11 : i64} {
  func.func @_bigram_loss_logits_kernel(%arg0: i32, %arg1: memref<8x1xi32, #tpu.memory_space<vmem>>, %arg2: memref<8x1xi32, #tpu.memory_space<vmem>>, %arg3: memref<128x128xf32, #tpu.memory_space<vmem>>, %arg4: memref<8x128xf32, #tpu.memory_space<vmem>>, %arg5: memref<8x1xf32, #tpu.memory_space<vmem>>) attributes {dimension_semantics = [#tpu.dimension_semantics<parallel>], iteration_bounds = array<i64: 2>, scalar_prefetch = 0 : i64, scratch_operands = 0 : i64, tpu.core_type = #tpu.core_type<tc>, window_params = [{transform_indices = @transform_0, window_bounds = array<i64: 8, 1>}, {transform_indices = @transform_1, window_bounds = array<i64: 8, 1>}, {pipeline_mode = #tpu.pipeline_mode<synchronous>, transform_indices = @transform_2, window_bounds = array<i64: 128, 128>}, {transform_indices = @transform_3, window_bounds = array<i64: 8, 128>}, {transform_indices = @transform_4, window_bounds = array<i64: 8, 1>}]} {
    %c0 = arith.constant 0 : index
    %c0_0 = arith.constant 0 : index
    %0 = vector.load %arg1[%c0, %c0_0] : memref<8x1xi32, #tpu.memory_space<vmem>>, vector<8x1xi32>
    %1 = tpu.iota {dimensions = array<i32: 1>} : vector<8x128xi32>
    %2 = vector.broadcast %0 : vector<8x1xi32> to vector<8x128xi32>
    %3 = arith.cmpi eq, %2, %1 : vector<8x128xi32>
    %4 = arith.extui %3 : vector<8x128xi1> to vector<8x128xi32>
    %5 = arith.sitofp %4 : vector<8x128xi32> to vector<8x128xf32>
    %c0_1 = arith.constant 0 : index
    %c0_2 = arith.constant 0 : index
    %6 = vector.load %arg3[%c0_1, %c0_2] : memref<128x128xf32, #tpu.memory_space<vmem>>, vector<128x128xf32>
    %cst = arith.constant dense<0.000000e+00> : vector<8x128xf32>
    %7 = tpu.matmul %5, %6, %cst {dimension_numbers = #tpu.dot_dimension_numbers<[1], [0], [0], [1], [0, 0, 1, 1], [], []>} : vector<8x128xf32>, vector<128x128xf32>, vector<8x128xf32> -> vector<8x128xf32>
    %c0_3 = arith.constant 0 : index
    %c0_4 = arith.constant 0 : index
    %8 = vector.load %arg4[%c0_3, %c0_4] : memref<8x128xf32, #tpu.memory_space<vmem>>, vector<8x128xf32>
    tpu.vector_store %arg4[%c0_3, %c0_4], %7 {strides = array<i32>} : memref<8x128xf32, #tpu.memory_space<vmem>>, vector<8x128xf32>,
    %c0_5 = arith.constant 0 : index
    %c0_6 = arith.constant 0 : index
    %9 = vector.load %arg2[%c0_5, %c0_6] : memref<8x1xi32, #tpu.memory_space<vmem>>, vector<8x1xi32>
    %c65_i32 = arith.constant 65 : i32
    %10 = vector.broadcast %c65_i32 : i32 to vector<8x128xi32>
    %11 = arith.cmpi slt, %1, %10 : vector<8x128xi32>
    %cst_7 = arith.constant 0xFF800000 : f32
    %12 = vector.broadcast %cst_7 : f32 to vector<8x128xf32>
    %13 = arith.select %11, %7, %12 : vector<8x128xi1>, vector<8x128xf32>
    %cst_8 = arith.constant dense<0xFF800000> : vector<8xf32>
    %14 = vector.multi_reduction <maximumf>, %13, %cst_8 [1] : vector<8x128xf32> to vector<8xf32>
    %15 = vector.shape_cast %14 : vector<8xf32> to vector<8x1xf32>
    %16 = vector.broadcast %15 : vector<8x1xf32> to vector<8x128xf32>
    %17 = arith.subf %13, %16 : vector<8x128xf32>
    %18 = math.exp %17 : vector<8x128xf32>
    %cst_9 = arith.constant dense<0.000000e+00> : vector<8xf32>
    %19 = vector.multi_reduction <add>, %18, %cst_9 [1] : vector<8x128xf32> to vector<8xf32>
    %20 = vector.shape_cast %19 : vector<8xf32> to vector<8x1xf32>
    %21 = math.log %20 : vector<8x1xf32>
    %22 = arith.addf %15, %21 : vector<8x1xf32>
    %23 = vector.broadcast %9 : vector<8x1xi32> to vector<8x128xi32>
    %24 = arith.cmpi eq, %23, %1 : vector<8x128xi32>
    %cst_10 = arith.constant 0.000000e+00 : f32
    %25 = vector.broadcast %cst_10 : f32 to vector<8x128xf32>
    %26 = arith.select %24, %7, %25 : vector<8x128xi1>, vector<8x128xf32>
    %cst_11 = arith.constant dense<0.000000e+00> : vector<8xf32>
    %27 = vector.multi_reduction <add>, %26, %cst_11 [1] : vector<8x128xf32> to vector<8xf32>
    %28 = vector.shape_cast %27 : vector<8xf32> to vector<8x1xf32>
    %29 = tpu.iota {dimensions = array<i32: 0>} : vector<8x1xi32>
    %c8_i32 = arith.constant 8 : i32
    %30 = arith.muli %arg0, %c8_i32 : i32
    %31 = vector.broadcast %30 : i32 to vector<8x1xi32>
    %32 = arith.addi %31, %29 : vector<8x1xi32>
    %c16_i32 = arith.constant 16 : i32
    %33 = vector.broadcast %c16_i32 : i32 to vector<8x1xi32>
    %34 = arith.cmpi slt, %32, %33 : vector<8x1xi32>
    %35 = arith.subf %22, %28 : vector<8x1xf32>
    %cst_12 = arith.constant 0.000000e+00 : f32
    %36 = vector.broadcast %cst_12 : f32 to vector<8x1xf32>
    %37 = arith.select %34, %35, %36 : vector<8x1xi1>, vector<8x1xf32>
    %c0_13 = arith.constant 0 : index
    %c0_14 = arith.constant 0 : index
    %38 = vector.load %arg5[%c0_13, %c0_14] : memref<8x1xf32, #tpu.memory_space<vmem>>, vector<8x1xf32>
    tpu.vector_store %arg5[%c0_13, %c0_14], %37 {strides = array<i32>} : memref<8x1xf32, #tpu.memory_space<vmem>>, vector<8x1xf32>,
    return
  }
  func.func @transform_0(%arg0: i32) -> (i32, i32) {
    %c0_i32 = arith.constant 0 : i32
    %c0_i32_0 = arith.constant 0 : i32
    return %arg0, %c0_i32 : i32, i32
  }
  func.func @transform_1(%arg0: i32) -> (i32, i32) {
    %c0_i32 = arith.constant 0 : i32
    %c0_i32_0 = arith.constant 0 : i32
    return %arg0, %c0_i32 : i32, i32
  }
  func.func @transform_2(%arg0: i32) -> (i32, i32) {
    %c0_i32 = arith.constant 0 : i32
    %c0_i32_0 = arith.constant 0 : i32
    %c0_i32_1 = arith.constant 0 : i32
    return %c0_i32, %c0_i32_0 : i32, i32
  }
  func.func @transform_3(%arg0: i32) -> (i32, i32) {
    %c0_i32 = arith.constant 0 : i32
    %c0_i32_0 = arith.constant 0 : i32
    return %arg0, %c0_i32 : i32, i32
  }
  func.func @transform_4(%arg0: i32) -> (i32, i32) {
    %c0_i32 = arith.constant 0 : i32
    %c0_i32_0 = arith.constant 0 : i32
    return %arg0, %c0_i32 : i32, i32
  }
}

</mosaic_0001>

<llo_original>
// kernel: _bigram_pallas_loss_logits.1
$region0: #{_bigram_pallas_loss_logits.1}
  #allocation0 [shape = 'u32[]', space=smem, size = 0x4, offset = 0x4, fixed_abs, tag = 'smem constant byte address 0x4 - core index']
  #allocation1 [shape = 'u32[72,128]{1,0:T(1,128)}', space=vmem, size = 0x9000, scoped, tag = 'internal scratch']
  %s0 = inlined_call_operand.vmem [shape: s32[16,1], index: 0, kind: input, shape index: {}]
  %s1 = inlined_call_operand.vmem [shape: s32[16,1], index: 1, kind: input, shape index: {}]
  %s2 = inlined_call_operand.hbm [shape: f32[128,128], index: 2, kind: input, shape index: {}]
  %s3 = inlined_call_operand.hbm [shape: f32[16,128], index: 3, kind: output, shape index: {0}]
  %s4 = inlined_call_operand.vmem [shape: f32[16,1], index: 4, kind: output, shape index: {1}]
  %5 = xla_tuple %s3, %s4
  %s6 = sld [smem:[#allocation0]]
  $region57: #{_bigram_pallas_loss_logits.1} parent=0
    _
  %s8 = ssub.s32 1, %s6
  %s9 = scalar_select 0, %s8, %s6
  $region1: #{_bigram_pallas_loss_logits.1} parent=0
    #allocation2 [shape = 'u8[65536]{0}', space=vmem, size = 0x10000, scoped, tag = 'input window, operand 2, single buffered']
    #allocation3 [shape = 's32[2]{0}', space=sflag, size = 0x8, scoped, tag = 'scoped memory for _bigram_pallas_loss_logits.1']
    #allocation4 [shape = 's32[2]{0}', space=sflag, size = 0x8, scoped, tag = 'scoped memory for _bigram_pallas_loss_logits.1']
    #allocation5 [shape = 'u8[8192]{0}', space=vmem, size = 0x2000, scoped, tag = 'output window, operand 0']
    %10 = vsyncpa [#allocation3], 0
    %11 = vsyncpa [#allocation4], 0
    %s12 = scalar_lea.sflag [#allocation4], 1
    %13 = vsyncpa %s12, 0
    loop: start=0, step=1, limit=4
    $region2: #{_bigram_pallas_loss_logits.1} parent=1 // loop_pre_header
      _
    $region3: #{_bigram_pallas_loss_logits.1} parent=1 // loop_header
      %s15 = sphi 0, %s19
      %p16 = scmp.ge.s32.totalorder %s15, 4
      %s25 = sphi 0, %s27
      %s28 = sphi 0, %s25
      %s29 = sphi 0, %s28
      %s45 = sphi 0, %s29
      %s51 = sphi 0, %s53
      %s54 = sphi 0, %s51
      %s55 = sphi 0, %s54
      %s71 = sphi 0, %s55
      %s75 = sphi 0, %s75
      %s77 = sphi 0, %s75
      %s78 = sphi 0, %s77
      %s92 = sphi 0, %s78
      %s98 = sphi 0, %s100
      %s101 = sphi 0, %s98
      %s102 = sphi 0, %s101
      %s118 = sphi 0, %s102
      %s124 = sphi 0, %s126
      %s127 = sphi 0, %s124
      %s128 = sphi 0, %s127
      %s144 = sphi 0, %s128
    $region4: #{_bigram_pallas_loss_logits.1} parent=1 // loop_header_branch
      %18 = sbr.rel (%p16) target = $region8
    $region5: #{_bigram_pallas_loss_logits.1} parent=1 // loop_body
      %s20 = ssub.s32 %s15, 1
      %s21 = ssub.s32 %s15, 2
      %s22 = sadd.s32 %s15, 1
      %s23 = ssub.s32 %s15, %s22
      %p24 = scmp.eq.s32.totalorder %s23, 0
      %s26 = sadd.s32 %s25, 1
      %s27 = scalar_select %p24, %s25, %s26
      %p30 = pneg %p24
      %p31 = scmp.eq.s32.totalorder %s15, 1
      %p32 = por %p30, %p31
      %p33 = scmp.ne.s32.totalorder %s25, %s28
      %p34 = scmp.eq.s32.totalorder %s15, 0
      %p35 = por %p33, %p34
      %p36 = scmp.ne.s32.totalorder %s25, %s28
      %p37 = scmp.eq.s32.totalorder %s20, 1
      %p38 = por %p36, %p37
      %p39 = scmp.ne.s32.totalorder %s28, %s29
      %p40 = scmp.eq.s32.totalorder %s20, 0
      %p41 = por %p39, %p40
      %p42 = scmp.ne.s32.totalorder %s28, %s29
      %p43 = scmp.eq.s32.totalorder %s21, 1
      %p44 = por %p42, %p43
      %p46 = scmp.ne.s32.totalorder %s29, %s45
      %p47 = scmp.eq.s32.totalorder %s21, 0
      %p48 = por %p46, %p47
      %s49 = ssub.s32 %s15, %s22
      %p50 = scmp.eq.s32.totalorder %s49, 0
      %s52 = sadd.s32 %s51, 1
      %s53 = scalar_select %p50, %s51, %s52
      %p56 = pneg %p50
      %p57 = scmp.eq.s32.totalorder %s15, 1
      %p58 = por %p56, %p57
      %p59 = scmp.ne.s32.totalorder %s51, %s54
      %p60 = scmp.eq.s32.totalorder %s15, 0
      %p61 = por %p59, %p60
      %p62 = scmp.ne.s32.totalorder %s51, %s54
      %p63 = scmp.eq.s32.totalorder %s20, 1
      %p64 = por %p62, %p63
      %p65 = scmp.ne.s32.totalorder %s54, %s55
      %p66 = scmp.eq.s32.totalorder %s20, 0
      %p67 = por %p65, %p66
      %p68 = scmp.ne.s32.totalorder %s54, %s55
      %p69 = scmp.eq.s32.totalorder %s21, 1
      %p70 = por %p68, %p69
      %p72 = scmp.ne.s32.totalorder %s55, %s71
      %p73 = scmp.eq.s32.totalorder %s21, 0
      %p74 = por %p72, %p73
      %s76 = sadd.s32 %s75, 1
      %p79 = scmp.eq.s32.totalorder %s15, 1
      %p80 = scmp.ne.s32.totalorder %s75, %s77
      %p81 = scmp.eq.s32.totalorder %s15, 0
      %p82 = por %p80, %p81
      %p83 = scmp.ne.s32.totalorder %s75, %s77
      %p84 = scmp.eq.s32.totalorder %s20, 1
      %p85 = por %p83, %p84
      %p86 = scmp.ne.s32.totalorder %s77, %s78
      %p87 = scmp.eq.s32.totalorder %s20, 0
      %p88 = por %p86, %p87
      %p89 = scmp.ne.s32.totalorder %s77, %s78
      %p90 = scmp.eq.s32.totalorder %s21, 1
      %p91 = por %p89, %p90
      %p93 = scmp.ne.s32.totalorder %s78, %s92
      %p94 = scmp.eq.s32.totalorder %s21, 0
      %p95 = por %p93, %p94
      %s96 = ssub.s32 %s15, %s22
      %p97 = scmp.eq.s32.totalorder %s96, 0
      %s99 = sadd.s32 %s98, 1
      %s100 = scalar_select %p97, %s98, %s99
      %p103 = pneg %p97
      %p104 = scmp.eq.s32.totalorder %s15, 1
      %p105 = por %p103, %p104
      %p106 = scmp.ne.s32.totalorder %s98, %s101
      %p107 = scmp.eq.s32.totalorder %s15, 0
      %p108 = por %p106, %p107
      %p109 = scmp.ne.s32.totalorder %s98, %s101
      %p110 = scmp.eq.s32.totalorder %s20, 1
      %p111 = por %p109, %p110
      %p112 = scmp.ne.s32.totalorder %s101, %s102
      %p113 = scmp.eq.s32.totalorder %s20, 0
      %p114 = por %p112, %p113
      %p115 = scmp.ne.s32.totalorder %s101, %s102
      %p116 = scmp.eq.s32.totalorder %s21, 1
      %p117 = por %p115, %p116
      %p119 = scmp.ne.s32.totalorder %s102, %s118
      %p120 = scmp.eq.s32.totalorder %s21, 0
      %p121 = por %p119, %p120
      %s122 = ssub.s32 %s15, %s22
      %p123 = scmp.eq.s32.totalorder %s122, 0
      %s125 = sadd.s32 %s124, 1
      %s126 = scalar_select %p123, %s124, %s125
      %p129 = pneg %p123
      %p130 = scmp.eq.s32.totalorder %s15, 1
      %p131 = por %p129, %p130
      %p132 = scmp.ne.s32.totalorder %s124, %s127
      %p133 = scmp.eq.s32.totalorder %s15, 0
      %p134 = por %p132, %p133
      %p135 = scmp.ne.s32.totalorder %s124, %s127
      %p136 = scmp.eq.s32.totalorder %s20, 1
      %p137 = por %p135, %p136
      %p138 = scmp.ne.s32.totalorder %s127, %s128
      %p139 = scmp.eq.s32.totalorder %s20, 0
      %p140 = por %p138, %p139
      %p141 = scmp.ne.s32.totalorder %s127, %s128
      %p142 = scmp.eq.s32.totalorder %s21, 1
      %p143 = por %p141, %p142
      %p145 = scmp.ne.s32.totalorder %s128, %s144
      %p146 = scmp.eq.s32.totalorder %s21, 0
      %p147 = por %p145, %p146
      %p148 = scmp.le.s32.totalorder 1, %s15
      %p149 = scmp.lt.s32.totalorder %s15, 3
      %p150 = pnand %p148, %p149
      %p151 = pneg %p150
      // Predicated region
      $region9: #{_bigram_pallas_loss_logits.1} parent=5 // pred_check
        _
      $region10: #{_bigram_pallas_loss_logits.1} parent=5 // pred_check_branch
        %153 = sbr.rel (%p150) target = $region12
      $region11: #{_bigram_pallas_loss_logits.1} parent=5 // pred_region
        %s154 = ssub.s32 %s15, 1
        // Predicated region
        $region13: #{_bigram_pallas_loss_logits.1} parent=11 // pred_check
          %p155 = pneg %p88
        $region14: #{_bigram_pallas_loss_logits.1} parent=11 // pred_check_branch
          %157 = sbr.rel (%p155) target = $region16
        $region15: #{_bigram_pallas_loss_logits.1} parent=11 // pred_region
          %159 = vsyncadd [#allocation3], 0
          %s160 = sshll.u32 %s2, 4
          %s161 = int_to_ptr.hbm [resolvable:$true] %s160
          %s162 = sshll.u32 [#allocation2], 4
          %s163 = int_to_ptr.vmem [resolvable:$true] %s162
          %168 = dma.hbm_to_vmem [thread:$0]  %s161, 2048, %s163, [#allocation3], 128, 128, 8
        $region16: #{_bigram_pallas_loss_logits.1} parent=11 // pred_fallthru
          _
      $region12: #{_bigram_pallas_loss_logits.1} parent=5 // pred_fallthru
        _
      %p169 = scmp.lt.s32.totalorder %s15, 2
      // Predicated region
      $region17: #{_bigram_pallas_loss_logits.1} parent=5 // pred_check
        %p170 = pneg %p169
      $region18: #{_bigram_pallas_loss_logits.1} parent=5 // pred_check_branch
        %172 = sbr.rel (%p170) target = $region20
      $region19: #{_bigram_pallas_loss_logits.1} parent=5 // pred_region
        // Predicated region
        $region21: #{_bigram_pallas_loss_logits.1} parent=19 // pred_check
          %p173 = pneg %p35
        $region22: #{_bigram_pallas_loss_logits.1} parent=19 // pred_check_branch
          %175 = sbr.rel (%p173) target = $region24
        $region23: #{_bigram_pallas_loss_logits.1} parent=19 // pred_region
          %p176 = scmp.lt.s32.totalorder %s15, 1
          %s177 = scalar_select %p176, %s15, 1
          %s178 = smul.addr %s177, 8
          %s179 = scalar_lea.vmem %s0, %s178
        $region24: #{_bigram_pallas_loss_logits.1} parent=19 // pred_fallthru
          _
        // Predicated region
        $region25: #{_bigram_pallas_loss_logits.1} parent=19 // pred_check
          %p180 = pneg %p61
        $region26: #{_bigram_pallas_loss_logits.1} parent=19 // pred_check_branch
          %182 = sbr.rel (%p180) target = $region28
        $region27: #{_bigram_pallas_loss_logits.1} parent=19 // pred_region
          %p183 = scmp.lt.s32.totalorder %s15, 1
          %s184 = scalar_select %p183, %s15, 1
          %s185 = smul.addr %s184, 8
          %s186 = scalar_lea.vmem %s1, %s185
        $region28: #{_bigram_pallas_loss_logits.1} parent=19 // pred_fallthru
          _
      $region20: #{_bigram_pallas_loss_logits.1} parent=5 // pred_fallthru
        _
      %p187 = scmp.le.s32.totalorder 1, %s15
      %p188 = scmp.lt.s32.totalorder %s15, 3
      %p189 = pnand %p187, %p188
      %p190 = pneg %p189
      // Predicated region
      $region29: #{_bigram_pallas_loss_logits.1} parent=5 // pred_check
        _
      $region30: #{_bigram_pallas_loss_logits.1} parent=5 // pred_check_branch
        %192 = sbr.rel (%p189) target = $region32
      $region31: #{_bigram_pallas_loss_logits.1} parent=5 // pred_region
        %s193 = ssub.s32 %s15, 1
        // Predicated region
        $region33: #{_bigram_pallas_loss_logits.1} parent=31 // pred_check
          %p194 = pneg %p88
        $region34: #{_bigram_pallas_loss_logits.1} parent=31 // pred_check_branch
          %196 = sbr.rel (%p194) target = $region36
        $region35: #{_bigram_pallas_loss_logits.1} parent=31 // pred_region
          %198 = dma.done [#allocation3], 2048
        $region36: #{_bigram_pallas_loss_logits.1} parent=31 // pred_fallthru
          _
        %p199 = scmp.lt.s32.totalorder %s20, 1
        %s200 = scalar_select %p199, %s20, 1
        %s201 = smul.addr %s200, 8
        %s202 = scalar_lea.vmem %s0, %s201
        %p203 = pneg %p41
        %p204 = pneg %p38
        %p205 = scmp.lt.s32.totalorder %s20, 1
        %s206 = scalar_select %p205, %s20, 1
        %s207 = smul.addr %s206, 8
        %s208 = scalar_lea.vmem %s1, %s207
        %p209 = pneg %p67
        %p210 = pneg %p64
        %p211 = pneg %p88
        %p212 = pneg %p85
        %p213 = pneg %p114
        %p214 = pneg %p111
        %s215 = sand.u32 %s101, 1
        %s216 = scalar_lea.sflag [#allocation4], %s215
        %s217 = sand.u32 %s101, 1
        %s218 = smul.addr %s217, 8
        %s219 = scalar_lea.vmem [#allocation5], %s218
        %p220 = pneg %p140
        %p221 = pneg %p137
        %p222 = scmp.lt.s32.totalorder %s20, 1
        %s223 = scalar_select %p222, %s20, 1
        %s224 = smul.addr %s223, 8
        %s225 = scalar_lea.vmem %s4, %s224
        %p226 = scmp.lt.s32.totalorder %s20, 1
        %s227 = scalar_select %p226, %s20, 1
        %s228 = smul.addr %s227, 8
        %s229 = scalar_lea.vmem %s0, %s228
        %p230 = scmp.lt.s32.totalorder %s20, 1
        %s231 = scalar_select %p230, %s20, 1
        %s232 = smul.addr %s231, 8
        %s233 = scalar_lea.vmem %s1, %s232
        %p234 = scmp.lt.s32.totalorder %s20, 1
        %s235 = scalar_select %p234, %s20, 1
        %s236 = smul.addr %s235, 8
        %s237 = scalar_lea.vmem %s4, %s236
        %v238 = vld [vmem:[%s229] sm:$0xff]
        %v239 = vlaneseq
        %v240 = vand.u32 %v239, 127
        %241 = vset.pattern.permute.xlu0 0
        %242 = vperm.xlu0 %241, %v238
        %v243 = vpop.permute.xlu0 %242
        %vm244 = vcmp.eq.s32.totalorder %v243, %v240
        %v245 = vsel %vm244, 1, 0
        %v246 = vcvt.s32.f32 %v245
        %v247 = vld [vmem:[#allocation2] sm:$0xff]
        %v248 = vld [vmem:[#allocation2 + $0x8] sm:$0xff]
        %v249 = vld [vmem:[#allocation2 + $0x10] sm:$0xff]
        %v250 = vld [vmem:[#allocation2 + $0x18] sm:$0xff]
        %v251 = vld [vmem:[#allocation2 + $0x20] sm:$0xff]
        %v252 = vld [vmem:[#allocation2 + $0x28] sm:$0xff]
        %v253 = vld [vmem:[#allocation2 + $0x30] sm:$0xff]
        %v254 = vld [vmem:[#allocation2 + $0x38] sm:$0xff]
        %v255 = vld [vmem:[#allocation2 + $0x40] sm:$0xff]
        %v256 = vld [vmem:[#allocation2 + $0x48] sm:$0xff]
        %v257 = vld [vmem:[#allocation2 + $0x50] sm:$0xff]
        %v258 = vld [vmem:[#allocation2 + $0x58] sm:$0xff]
        %v259 = vld [vmem:[#allocation2 + $0x60] sm:$0xff]
        %v260 = vld [vmem:[#allocation2 + $0x68] sm:$0xff]
        %v261 = vld [vmem:[#allocation2 + $0x70] sm:$0xff]
        %v262 = vld [vmem:[#allocation2 + $0x78] sm:$0xff]
        %263 = vmatpush.msra.mxu0 %v262
        %264 = vmatpush.msra.mxu0 %v261
        %265 = vmatpush.msra.mxu0 %v260
        %266 = vmatpush.msra.mxu0 %v259
        %267 = vmatpush.msra.mxu0 %v258
        %268 = vmatpush.msra.mxu0 %v257
        %269 = vmatpush.msra.mxu0 %v256
        %270 = vmatpush.msra.mxu0 %v255
        %271 = vmatpush.msra.mxu0 %v254
        %272 = vmatpush.msra.mxu0 %v253
        %273 = vmatpush.msra.mxu0 %v252
        %274 = vmatpush.msra.mxu0 %v251
        %275 = vmatpush.msra.mxu0 %v250
        %276 = vmatpush.msra.mxu0 %v249
        %277 = vmatpush.msra.mxu0 %v248
        %278 = vmatpush.msra.mxu0 %v247
        %279 = vmatmul.f32.gmra.mxu0 %v246
        %v280 = vpop.f32.mrf.mxu0
        %v281 = vadd.f32 0.0, %v280
        %282 = vdwg.mxu0
        %283 = vst [vmem:[%s219] sm:$0xff] %v281
        %v284 = vld [vmem:[%s233] sm:$0xff]
        %vm285 = vcmp.lt.s32.totalorder %v240, 65
        %v286 = vsel %vm285, %v281, -inf
        %287 = vmax.xlane.f32.xlu0 %v286
        %v288 = vpop.xlane.xlu0 %287
        %v289 = vsub.f32 %v286, %v288
        %v290 = vmul.f32 %v289, 1.442695
        %v291 = vpow.pop %v290
        %292 = vadd.xlane.f32.xlu0 %v291
        %v293 = vpop.xlane.xlu0 %292
        %v294 = vlog2.pop %v293
        %v295 = vmul.f32 %v294, 0.6931472
        %v296 = vadd.f32 %v288, %v295
        %297 = vset.pattern.permute.xlu0 0
        %298 = vperm.xlu0 %297, %v284
        %v299 = vpop.permute.xlu0 %298
        %vm300 = vcmp.eq.s32.totalorder %v299, %v240
        %v301 = vsel %vm300, %v281, 0.0
        %302 = vadd.xlane.f32.xlu0 %v301
        %v303 = vpop.xlane.xlu0 %302
        %v304 = vlaneseq
        %v305 = vshrl.u32 %v304, 7
        %s306 = smul.u32 %s20, 8
        %v307 = vstv %s306
        %v308 = vadd.s32 %v307, %v305
        %vm309 = vcmp.lt.s32.totalorder %v308, 16
        %v310 = vsub.f32 %v296, %v303
        %v311 = vsel %vm309, %v310, 0.0
        %vm312 = vcmask 7168
        %313 = vst.msk [vmem:[%s237] sm:$0xff] %vm312, %v311
        %s314 = sand.u32 %s101, 1
        %s315 = scalar_lea.sflag [#allocation4], %s314
        %s316 = sand.u32 %s101, 1
        %s317 = smul.addr %s316, 8
        %s318 = scalar_lea.vmem [#allocation5], %s317
        %p319 = scmp.lt.s32.totalorder %s20, 1
        %s320 = scalar_select %p319, %s20, 1
        %s321 = smul.addr %s320, 8
        %s322 = scalar_lea.vmem %s4, %s321
        // Predicated region
        $region37: #{_bigram_pallas_loss_logits.1} parent=31 // pred_check
          %p323 = pneg %p111
        $region38: #{_bigram_pallas_loss_logits.1} parent=31 // pred_check_branch
          %325 = sbr.rel (%p323) target = $region40
        $region39: #{_bigram_pallas_loss_logits.1} parent=31 // pred_region
          %327 = vsyncadd %s315, 0
          %s328 = smul.addr %s20, 8
          %s329 = scalar_lea.hbm %s3, %s328
          %s331 = sshll.u32 %s318, 4
          %s332 = int_to_ptr.vmem [resolvable:$true] %s331
          %s333 = sshll.u32 %s329, 4
          %s334 = int_to_ptr.hbm [resolvable:$true] %s333
          %336 = dma.vmem_to_hbm [thread:$0]  %s332, 128, %s334, %s315
        $region40: #{_bigram_pallas_loss_logits.1} parent=31 // pred_fallthru
          _
        // Predicated region
        $region41: #{_bigram_pallas_loss_logits.1} parent=31 // pred_check
          %p337 = pneg %p137
        $region42: #{_bigram_pallas_loss_logits.1} parent=31 // pred_check_branch
          %339 = sbr.rel (%p337) target = $region44
        $region43: #{_bigram_pallas_loss_logits.1} parent=31 // pred_region
          _
        $region44: #{_bigram_pallas_loss_logits.1} parent=31 // pred_fallthru
          _
      $region32: #{_bigram_pallas_loss_logits.1} parent=5 // pred_fallthru
        _
      %p340 = scmp.le.s32.totalorder 2, %s15
      // Predicated region
      $region45: #{_bigram_pallas_loss_logits.1} parent=5 // pred_check
        %p341 = pneg %p340
      $region46: #{_bigram_pallas_loss_logits.1} parent=5 // pred_check_branch
        %343 = sbr.rel (%p341) target = $region48
      $region47: #{_bigram_pallas_loss_logits.1} parent=5 // pred_region
        %s344 = ssub.s32 %s15, 2
        // Predicated region
        $region49: #{_bigram_pallas_loss_logits.1} parent=47 // pred_check
          %p345 = pneg %p117
        $region50: #{_bigram_pallas_loss_logits.1} parent=47 // pred_check_branch
          %347 = sbr.rel (%p345) target = $region52
        $region51: #{_bigram_pallas_loss_logits.1} parent=47 // pred_region
          %s348 = sand.u32 %s102, 1
          %s349 = scalar_lea.sflag [#allocation4], %s348
          %s350 = sand.u32 %s102, 1
          %s351 = smul.addr %s350, 8
          %s352 = scalar_lea.vmem [#allocation5], %s351
          %354 = dma.done %s349, 128
        $region52: #{_bigram_pallas_loss_logits.1} parent=47 // pred_fallthru
          _
        // Predicated region
        $region53: #{_bigram_pallas_loss_logits.1} parent=47 // pred_check
          %p355 = pneg %p143
        $region54: #{_bigram_pallas_loss_logits.1} parent=47 // pred_check_branch
          %357 = sbr.rel (%p355) target = $region56
        $region55: #{_bigram_pallas_loss_logits.1} parent=47 // pred_region
          %p358 = scmp.lt.s32.totalorder %s21, 1
          %s359 = scalar_select %p358, %s21, 1
          %s360 = smul.addr %s359, 8
          %s361 = scalar_lea.vmem %s4, %s360
        $region56: #{_bigram_pallas_loss_logits.1} parent=47 // pred_fallthru
          _
      $region48: #{_bigram_pallas_loss_logits.1} parent=5 // pred_fallthru
        _
    $region6: #{_bigram_pallas_loss_logits.1} parent=1 // loop_footer
      %s19 = sadd.s32 1, %s15
    $region7: #{_bigram_pallas_loss_logits.1} parent=1 // loop_footer_branch
      %14 = sbr.rel target = $region3
    $region8: #{_bigram_pallas_loss_logits.1} parent=1 // loop_exit
      _
    %362 = vsyncpa [#allocation3], 1
    %s363 = scalar_lea.sflag [#allocation3], 1
    %364 = vsyncpa %s363, 1
    %365 = vsyncpa [#allocation4], 1
    %s366 = scalar_lea.sflag [#allocation4], 1
    %367 = vsyncpa %s366, 1

</llo_original>
